<compile_context>
chip_gen: v5e
topology: v5e:2x2
jax: 0.10.0
libtpu: 0.0.40
codegen_flags: <defaults>
</compile_context>

<pallas_src>
import math

import jax
import jax.numpy as jnp
from jax.experimental import pallas as pl
from jax.experimental.pallas import tpu as pltpu


def _prediction_head_kernel(h_ref, w_ref, b_ref, o_ref):
    # h_ref: (TM, K)   w_ref: (K, Np)   b_ref: (1, Np)   o_ref: (TM, Np)
    z = jnp.dot(h_ref[...], w_ref[...], preferred_element_type=jnp.float32)
    z = z + b_ref[...].astype(jnp.float32)          # broadcast bias over rows
    o_ref[...] = jax.nn.sigmoid(z).astype(o_ref.dtype)


def _round_up(x: int, m: int) -> int:
    return ((x + m - 1) // m) * m


def prepare_params(W, b):
    """One-time parameter prep (call at init, NOT per forward).

    W: [output_dim, input_dim] (PyTorch nn.Linear layout), b: [output_dim].
    Returns:
      w_t_pad: [input_dim, Np]  (transposed + zero-padded to lane-dense Np)
      b_pad:   [1, Np]
    """
    output_dim, input_dim = W.shape
    n_pad = _round_up(max(output_dim, 1), 128)
    w_t_pad = jnp.zeros((input_dim, n_pad), W.dtype).at[:, :output_dim].set(W.T)
    b_pad = jnp.zeros((1, n_pad), b.dtype).at[0, :output_dim].set(b)
    return w_t_pad, b_pad


def prediction_head(H, w_t_pad, b_pad, output_dim, *, tm_max=512):
    """H: [..., input_dim]; w_t_pad/b_pad from prepare_params(). Returns [..., output_dim]."""
    *lead, input_dim = H.shape
    n_pad = w_t_pad.shape[1]
    M = int(math.prod(lead)) if lead else 1

    h2d = H.reshape(M, input_dim)

    # Row-tile: full M when small (block == array dim is always legal); otherwise
    # 512-row tiles (multiple of 8) with the tail block clipped on writeback.
    tm = M if M <= tm_max else tm_max
    grid_m = pl.cdiv(M, tm)

    itemsize = jnp.dtype(H.dtype).itemsize
    cost = pl.CostEstimate(
        flops=2 * M * input_dim * n_pad,
        transcendentals=M * n_pad,                                   # sigmoid exp
        bytes_accessed=itemsize * (M * input_dim + input_dim * n_pad + M * n_pad),
    )

    out2d = pl.pallas_call(
        _prediction_head_kernel,
        out_shape=jax.ShapeDtypeStruct((M, n_pad), H.dtype),
        grid_spec=pltpu.PrefetchScalarGridSpec(
            num_scalar_prefetch=0,
            grid=(grid_m,),
            in_specs=[
                pl.BlockSpec((tm, input_dim), lambda i: (i, 0)),      # H tiles stream
                pl.BlockSpec((input_dim, n_pad), lambda i: (0, 0)),   # W resident
                pl.BlockSpec((1, n_pad), lambda i: (0, 0)),           # b resident
            ],
            out_specs=pl.BlockSpec((tm, n_pad), lambda i: (i, 0)),
        ),
        compiler_params=pltpu.CompilerParams(
            dimension_semantics=("parallel",),   # independent row blocks -> 2 TCs on v7x
        ),
        cost_estimate=cost,
    )(h2d, w_t_pad, b_pad)

    return out2d[:, :output_dim].reshape(*lead, output_dim)


if __name__ == "__main__":
    # Small shapes implied by the module: tokens with hidden dim -> output dim.
    batch, seq, input_dim, output_dim = 2, 8, 32, 16

    key = jax.random.PRNGKey(0)
    k_h, k_w, k_b = jax.random.split(key, 3)

    H = jax.random.normal(k_h, (batch, seq, input_dim), dtype=jnp.float32)

    # Deterministic init mimicking nn.Linear default (uniform in +-1/sqrt(fan_in)).
    bound = 1.0 / math.sqrt(input_dim)
    W = jax.random.uniform(k_w, (output_dim, input_dim), dtype=jnp.float32,
                           minval=-bound, maxval=bound)
    b = jax.random.uniform(k_b, (output_dim,), dtype=jnp.float32,
                           minval=-bound, maxval=bound)

    # One-time param prep (transpose + lane-dense padding) -- out of the hot path.
    w_t_pad, b_pad = prepare_params(W, b)

    fwd = jax.jit(prediction_head, static_argnames=("output_dim", "tm_max"))
    Y = fwd(H, w_t_pad, b_pad, output_dim=output_dim)
    Y = jax.block_until_ready(Y)

    # Correctness check against plain-JAX reference.
    Y_ref = jax.nn.sigmoid(H @ W.T + b)
    assert Y.shape == (batch, seq, output_dim)
    assert jnp.allclose(Y, Y_ref, atol=1e-5, rtol=1e-5)

    print("KERNEL_OK")
</pallas_src>

<mosaic_0001>
module attributes {stable_mosaic.version = 11 : i64} {
  func.func @_prediction_head_kernel(%arg0: i32, %arg1: memref<16x32xf32, #tpu.memory_space<vmem>>, %arg2: memref<32x128xf32, #tpu.memory_space<vmem>>, %arg3: memref<1x128xf32, #tpu.memory_space<vmem>>, %arg4: memref<16x128xf32, #tpu.memory_space<vmem>>) attributes {dimension_semantics = [#tpu.dimension_semantics<parallel>], iteration_bounds = array<i64: 1>, scalar_prefetch = 0 : i64, scratch_operands = 0 : i64, tpu.core_type = #tpu.core_type<tc>, window_params = [{transform_indices = @transform_0, window_bounds = array<i64: 16, 32>}, {pipeline_mode = #tpu.pipeline_mode<synchronous>, transform_indices = @transform_1, window_bounds = array<i64: 32, 128>}, {pipeline_mode = #tpu.pipeline_mode<synchronous>, transform_indices = @transform_2, window_bounds = array<i64: 1, 128>}, {transform_indices = @transform_3, window_bounds = array<i64: 16, 128>}]} {
    %c0 = arith.constant 0 : index
    %c0_0 = arith.constant 0 : index
    %0 = vector.load %arg1[%c0, %c0_0] : memref<16x32xf32, #tpu.memory_space<vmem>>, vector<16x32xf32>
    %c0_1 = arith.constant 0 : index
    %c0_2 = arith.constant 0 : index
    %1 = vector.load %arg2[%c0_1, %c0_2] : memref<32x128xf32, #tpu.memory_space<vmem>>, vector<32x128xf32>
    %cst = arith.constant dense<0.000000e+00> : vector<16x128xf32>
    %2 = tpu.matmul %0, %1, %cst {dimension_numbers = #tpu.dot_dimension_numbers<[1], [0], [0], [1], [0, 0, 1, 1], [], []>} : vector<16x32xf32>, vector<32x128xf32>, vector<16x128xf32> -> vector<16x128xf32>
    %c0_3 = arith.constant 0 : index
    %c0_4 = arith.constant 0 : index
    %3 = vector.load %arg3[%c0_3, %c0_4] : memref<1x128xf32, #tpu.memory_space<vmem>>, vector<1x128xf32>
    %4 = vector.broadcast %3 : vector<1x128xf32> to vector<16x128xf32>
    %5 = arith.addf %2, %4 : vector<16x128xf32>
    %6 = arith.negf %5 : vector<16x128xf32>
    %7 = math.exp %6 : vector<16x128xf32>
    %cst_5 = arith.constant 1.000000e+00 : f32
    %8 = vector.broadcast %cst_5 : f32 to vector<16x128xf32>
    %9 = arith.addf %8, %7 : vector<16x128xf32>
    %10 = arith.divf %8, %9 : vector<16x128xf32>
    %c0_6 = arith.constant 0 : index
    %c0_7 = arith.constant 0 : index
    %11 = vector.load %arg4[%c0_6, %c0_7] : memref<16x128xf32, #tpu.memory_space<vmem>>, vector<16x128xf32>
    tpu.vector_store %arg4[%c0_6, %c0_7], %10 {strides = array<i32>} : memref<16x128xf32, #tpu.memory_space<vmem>>, vector<16x128xf32>,
    return
  }
  func.func @transform_0(%arg0: i32) -> (i32, i32) {
    %c0_i32 = arith.constant 0 : i32
    %c0_i32_0 = arith.constant 0 : i32
    return %arg0, %c0_i32 : i32, i32
  }
  func.func @transform_1(%arg0: i32) -> (i32, i32) {
    %c0_i32 = arith.constant 0 : i32
    %c0_i32_0 = arith.constant 0 : i32
    %c0_i32_1 = arith.constant 0 : i32
    return %c0_i32, %c0_i32_0 : i32, i32
  }
  func.func @transform_2(%arg0: i32) -> (i32, i32) {
    %c0_i32 = arith.constant 0 : i32
    %c0_i32_0 = arith.constant 0 : i32
    %c0_i32_1 = arith.constant 0 : i32
    return %c0_i32, %c0_i32_0 : i32, i32
  }
  func.func @transform_3(%arg0: i32) -> (i32, i32) {
    %c0_i32 = arith.constant 0 : i32
    %c0_i32_0 = arith.constant 0 : i32
    return %arg0, %c0_i32 : i32, i32
  }
}

</mosaic_0001>

<llo_original>
// kernel: prediction_head.1
$region0: #{prediction_head.1}
  #allocation0 [shape = 'u32[]', space=smem, size = 0x4, offset = 0x4, fixed_abs, tag = 'smem constant byte address 0x4 - core index']
  #allocation1 [shape = 'u32[72,128]{1,0:T(1,128)}', space=vmem, size = 0x9000, scoped, tag = 'internal scratch']
  %s0 = inlined_call_operand.hbm [shape: f32[16,32], index: 0, kind: input, shape index: {}]
  %s1 = inlined_call_operand.hbm [shape: f32[32,128], index: 1, kind: input, shape index: {}]
  %s2 = inlined_call_operand.vmem [shape: f32[1,128], index: 2, kind: input, shape index: {}]
  %s3 = inlined_call_operand.vmem [shape: f32[16,128], index: 3, kind: output, shape index: {}]
  %s4 = sld [smem:[#allocation0]]
  $region30: #{prediction_head.1} parent=0
    _
  %s6 = ssub.s32 1, %s4
  %s7 = scalar_select 0, %s6, %s4
  $region1: #{prediction_head.1} parent=0
    #allocation2 [shape = 'u8[8192]{0}', space=vmem, size = 0x2000, scoped, tag = 'input window, operand 0, single buffered']
    #allocation3 [shape = 's32[1]{0}', space=sflag, size = 0x4, scoped, tag = 'scoped memory for prediction_head.1']
    #allocation4 [shape = 'u8[16384]{0}', space=vmem, size = 0x4000, scoped, tag = 'input window, operand 1, single buffered']
    #allocation5 [shape = 's32[1]{0}', space=sflag, size = 0x4, scoped, tag = 'scoped memory for prediction_head.1']
    %8 = vsyncpa [#allocation3], 0
    %9 = vsyncpa [#allocation5], 0
    // Predicated region
    $region2: #{prediction_head.1} parent=1 // pred_check
      _
    $region3: #{prediction_head.1} parent=1 // pred_check_branch
      %11 = sbr.rel (0) target = $region5
    $region4: #{prediction_head.1} parent=1 // pred_region
      %13 = vsyncadd [#allocation3], 0
      %s14 = sshll.u32 %s0, 4
      %s15 = int_to_ptr.hbm [resolvable:$true] %s14
      %s16 = sshll.u32 [#allocation2], 4
      %s17 = int_to_ptr.vmem [resolvable:$true] %s16
      %22 = dma.hbm_to_vmem [thread:$0]  %s15, 256, %s17, [#allocation3], 128, 128, 8
    $region5: #{prediction_head.1} parent=1 // pred_fallthru
      _
    // Predicated region
    $region6: #{prediction_head.1} parent=1 // pred_check
      _
    $region7: #{prediction_head.1} parent=1 // pred_check_branch
      %24 = sbr.rel (0) target = $region9
    $region8: #{prediction_head.1} parent=1 // pred_region
      %26 = vsyncadd [#allocation5], 0
      %s27 = sshll.u32 %s1, 4
      %s28 = int_to_ptr.hbm [resolvable:$true] %s27
      %s29 = sshll.u32 [#allocation4], 4
      %s30 = int_to_ptr.vmem [resolvable:$true] %s29
      %35 = dma.hbm_to_vmem [thread:$0]  %s28, 512, %s30, [#allocation5], 128, 128, 8
    $region9: #{prediction_head.1} parent=1 // pred_fallthru
      _
    // Predicated region
    $region10: #{prediction_head.1} parent=1 // pred_check
      _
    $region11: #{prediction_head.1} parent=1 // pred_check_branch
      %37 = sbr.rel (0) target = $region13
    $region12: #{prediction_head.1} parent=1 // pred_region
      _
    $region13: #{prediction_head.1} parent=1 // pred_fallthru
      _
    // Predicated region
    $region14: #{prediction_head.1} parent=1 // pred_check
      _
    $region15: #{prediction_head.1} parent=1 // pred_check_branch
      %39 = sbr.rel (0) target = $region17
    $region16: #{prediction_head.1} parent=1 // pred_region
      %41 = dma.done [#allocation3], 256
    $region17: #{prediction_head.1} parent=1 // pred_fallthru
      _
    // Predicated region
    $region18: #{prediction_head.1} parent=1 // pred_check
      _
    $region19: #{prediction_head.1} parent=1 // pred_check_branch
      %43 = sbr.rel (0) target = $region21
    $region20: #{prediction_head.1} parent=1 // pred_region
      %45 = dma.done [#allocation5], 512
    $region21: #{prediction_head.1} parent=1 // pred_fallthru
      _
    %v46 = vld [vmem:[#allocation2] sm:$0xff]
    %v47 = vld [vmem:[#allocation2 + $0x8] sm:$0xff]
    %v48 = vld [vmem:[#allocation4] sm:$0xff]
    %v49 = vld [vmem:[#allocation4 + $0x8] sm:$0xff]
    %v50 = vld [vmem:[#allocation4 + $0x10] sm:$0xff]
    %v51 = vld [vmem:[#allocation4 + $0x18] sm:$0xff]
    %v52 = vld [vmem:[%s2] sm:$0x1]
    %v54 = vperm.slane %v52, 0
    %vm56 = vcmask 261120
    %v58 = vsel %vm56, %v46, 0
    %v61 = vsel %vm56, %v47, 0
    %63 = vmatpush.msra.mxu0 0.0
    %64 = vmatpush.msra.mxu0 0.0
    %65 = vmatpush.msra.mxu0 0.0
    %66 = vmatpush.msra.mxu0 0.0
    %67 = vmatpush.msra.mxu0 0.0
    %68 = vmatpush.msra.mxu0 0.0
    %69 = vmatpush.msra.mxu0 0.0
    %70 = vmatpush.msra.mxu0 0.0
    %71 = vmatpush.msra.mxu0 0.0
    %72 = vmatpush.msra.mxu0 0.0
    %73 = vmatpush.msra.mxu0 0.0
    %74 = vmatpush.msra.mxu0 0.0
    %75 = vmatpush.msra.mxu0 %v51
    %76 = vmatpush.msra.mxu0 %v50
    %77 = vmatpush.msra.mxu0 %v49
    %78 = vmatpush.msra.mxu0 %v48
    %79 = vmatmul.f32.gmra.mxu0 %v58
    %v80 = vpop.f32.mrf.mxu0
    %v81 = vadd.f32 %v54, %v80
    %82 = vmatmul.f32.gmra.mxu0 %v61
    %v83 = vpop.f32.mrf.mxu0
    %v84 = vadd.f32 %v54, %v83
    %85 = vdwg.mxu0
    %v86 = vxor.u32 %v81, 2147483648
    %v87 = vxor.u32 %v84, 2147483648
    %v88 = vmul.f32 %v86, 1.442695
    %v89 = vpow.pop %v88
    %v90 = vmul.f32 %v87, 1.442695
    %v91 = vpow.pop %v90
    %v92 = vadd.f32 %v89, 1.0
    %v93 = vadd.f32 %v91, 1.0
    %v94 = vrcp.pop %v92
    %v95 = vmul.f32 %v92, %v94
    %v96 = vsub.f32 1.0, %v95
    %v97 = vmul.f32 %v94, %v96
    %v98 = vadd.f32 %v94, %v97
    %vm99 = vweird.f32 %v92
    %vm100 = vweird.f32 %v94
    %vm101 = vmor %vm99, %vm100
    %v102 = vsel %vm101, %v94, %v98
    %v103 = vand.u32 2147483647, %v92
    %vm104 = vcmp.eq.f32.partialorder %v103, 8.507059e+37
    %v105 = vand.u32 %v92, 2147483648
    %v106 = vor.u32 1.1754944e-38, %v105
    %v107 = vsel %vm104, %v106, %v102
    %v108 = vmul.f32 1.0, %v107
    %v109 = vrcp.pop %v93
    %v110 = vmul.f32 %v93, %v109
    %v111 = vsub.f32 1.0, %v110
    %v112 = vmul.f32 %v109, %v111
    %v113 = vadd.f32 %v109, %v112
    %vm114 = vweird.f32 %v93
    %vm115 = vweird.f32 %v109
    %vm116 = vmor %vm114, %vm115
    %v117 = vsel %vm116, %v109, %v113
    %v118 = vand.u32 2147483647, %v93
    %vm119 = vcmp.eq.f32.partialorder %v118, 8.507059e+37
    %v120 = vand.u32 %v93, 2147483648
    %v121 = vor.u32 1.1754944e-38, %v120
    %v122 = vsel %vm119, %v121, %v117
    %v123 = vmul.f32 1.0, %v122
    %124 = vst [vmem:[%s3] sm:$0xff] %v108
    %125 = vst [vmem:[%s3 + $0x8] sm:$0xff] %v123
    // Predicated region
    $region22: #{prediction_head.1} parent=1 // pred_check
      _
    $region23: #{prediction_head.1} parent=1 // pred_check_branch
      %127 = sbr.rel (0) target = $region25
    $region24: #{prediction_head.1} parent=1 // pred_region
      _
    $region25: #{prediction_head.1} parent=1 // pred_fallthru
      _
    // Predicated region
    $region26: #{prediction_head.1} parent=1 // pred_check
      _
    $region27: #{prediction_head.1} parent=1 // pred_check_branch
      %129 = sbr.rel (0) target = $region29
    $region28: #{prediction_head.1} parent=1 // pred_region
      _
    $region29: #{prediction_head.1} parent=1 // pred_fallthru
      _
    %130 = vsyncpa [#allocation3], 1
    %131 = vsyncpa [#allocation5], 1

</llo_original>
